<compile_context>
chip_gen: v5e
topology: v5e:2x2
jax: 0.10.0
libtpu: 0.0.40
codegen_flags: <defaults>
</compile_context>

<pallas_src>
import functools

import jax
import jax.numpy as jnp
from jax.experimental import pallas as pl
from jax.experimental.pallas import tpu as pltpu

_LANE = 128
_MIN_VMEM_LIMIT = 32 * 1024 * 1024


def _cdiv(a, b):
    return -(-a // b)


def _physical_vmem_bytes():
    # ~128 MiB on v5e/v6e, 64 MiB per TensorCore on v7x.
    try:
        return int(pltpu.get_tpu_info().vmem_capacity_bytes)
    except Exception:
        return 64 * 1024 * 1024  # conservative: fits every supported chip


def _vmem_limit(needed_bytes, physical):
    # Always >= 32 MiB (v5e default scoped limit is 16 MiB), never above physical.
    return int(min(max(_MIN_VMEM_LIMIT, needed_bytes), physical - (2 << 20)))


# --------------------------------------------------------------------------
# Fast path: single pass, whole (C, HW) slab(s) resident per grid step.
# --------------------------------------------------------------------------
def _fused_kernel(x_ref, wt_ref, b_ref, o_ref, *, inv_hw):
    # x_ref: (nb, C, HW); wt_ref: (C_in, C_out); b_ref: (1, C_out)
    x = x_ref[...]

    # Global average pool, f32 accumulation, divide by logical H*W.
    pooled = jnp.sum(x.astype(jnp.float32), axis=-1) * inv_hw          # (nb, C_in)

    # 1x1 conv on the pooled vector: a tiny matmul on the otherwise-idle MXU
    # (weight is pre-transposed in the wrapper so no in-kernel transpose).
    logits = jnp.dot(pooled, wt_ref[...].astype(jnp.float32),
                     preferred_element_type=jnp.float32)               # (nb, C_out)
    logits = logits + b_ref[...].astype(jnp.float32)
    scale = jax.nn.sigmoid(logits).astype(x.dtype)                     # (nb, C_out)

    # Channel-wise re-weighting; multiply stays in the input dtype.
    o_ref[...] = (x * scale[:, :, None]).astype(o_ref.dtype)


def _arm_fused(x, w_t, b2d, *, N, C, HW, itemsize, io_per_item, tmp_per_item,
               w_bytes, budget, physical, donate_input):
    # Batch items per grid step: as many as fit the VMEM budget, but always
    # >= 2 grid steps when N >= 2 so both v7x TensorCores get work.
    avail = max(io_per_item + tmp_per_item, budget - w_bytes)
    nb_max = max(1, avail // (io_per_item + tmp_per_item))
    steps_min = 2 if N >= 2 else 1
    steps = max(steps_min, _cdiv(N, nb_max))
    nb = _cdiv(N, steps)                      # balanced blocks; ragged tail handled
    grid_n = _cdiv(N, nb)
    # TODO(synk): for N == 1 on v7x one TC is idle here; the two-pass path is
    # used instead only when the slab does not fit VMEM.

    needed = nb * (io_per_item + tmp_per_item) + w_bytes + (4 << 20)
    vmem_limit = _vmem_limit(needed, physical)

    kernel = functools.partial(_fused_kernel, inv_hw=1.0 / float(HW))
    extra = {"input_output_aliases": {0: 0}} if donate_input else {}

    return pl.pallas_call(
        kernel,
        out_shape=jax.ShapeDtypeStruct((N, C, HW), x.dtype),
        grid=(grid_n,),
        in_specs=[
            pl.BlockSpec((nb, C, HW), lambda n: (n, 0, 0)),   # full-extent HW block
            pl.BlockSpec((C, C), lambda n: (0, 0)),
            pl.BlockSpec((1, C), lambda n: (0, 0)),
        ],
        out_specs=pl.BlockSpec((nb, C, HW), lambda n: (n, 0, 0)),
        compiler_params=pltpu.CompilerParams(
            dimension_semantics=("parallel",),
            vmem_limit_bytes=vmem_limit,
        ),
        **extra,
    )(x, w_t, b2d)


# --------------------------------------------------------------------------
# Fallback path: two HW-tiled passes (slab too big for VMEM).
# --------------------------------------------------------------------------
def _pool_sum_kernel(x_ref, sum_ref, *, hw, half_tiles):
    # x_ref: (1, C, t_hw); sum_ref: (1, C, 1) f32, resident across the HW axis.
    s = pl.program_id(1)
    h = pl.program_id(2)

    @pl.when(h == 0)
    def _():
        sum_ref[...] = jnp.zeros_like(sum_ref)

    t_hw = x_ref.shape[-1]
    col0 = (s * half_tiles + h) * t_hw                 # logical start column of this tile
    iota = jax.lax.broadcasted_iota(jnp.int32, x_ref.shape, 2)
    mask = (col0 + iota) < hw                          # mask ragged tail / duplicated tile
    xf = jnp.where(mask, x_ref[...].astype(jnp.float32), 0.0)
    sum_ref[...] += jnp.sum(xf, axis=-1, keepdims=True)


def _apply_scale_kernel(x_ref, s_ref, o_ref):
    # x_ref: (1, C, t_hw); s_ref: (1, C, 1) — pure DMA + VPU multiply.
    x = x_ref[...]
    o_ref[...] = (x * s_ref[...].astype(x.dtype)).astype(o_ref.dtype)


def _pick_hw_tile(hw, c, itemsize, budget):
    # Largest multiple-of-128 tile whose in+out double-buffered footprint
    # (plus f32 temp) fits the budget; 128-lane floor; full extent ceiling.
    per_col = 4 * c * itemsize + 4 * c
    t = (budget // per_col) // _LANE * _LANE
    t = max(_LANE, t)
    if t >= hw:
        t = hw
    return t


def _arm_two_pass(x, w_t, bias, *, N, C, HW, itemsize, budget, physical,
                  donate_input):
    t_hw = _pick_hw_tile(HW, C, itemsize, budget)
    n_tiles = _cdiv(HW, t_hw)
    half = _cdiv(n_tiles, 2)                    # 2-way split of the reduction

    needed = 4 * C * t_hw * itemsize + C * t_hw * 4 + (4 << 20)
    vmem_limit = _vmem_limit(needed, physical)

    # Pass 1: per-(n, c) spatial partial sums, 2-way split over a parallel axis
    # so both v7x TensorCores work even when N == 1. Block indices beyond the
    # last tile are clamped and their contribution is masked to zero.
    def in_map1(n, s, h):
        return (n, 0, jnp.minimum(s * half + h, n_tiles - 1))

    sums_split = pl.pallas_call(
        functools.partial(_pool_sum_kernel, hw=HW, half_tiles=half),
        out_shape=jax.ShapeDtypeStruct((N * 2, C, 1), jnp.float32),
        grid=(N, 2, half),
        in_specs=[pl.BlockSpec((1, C, t_hw), in_map1)],
        out_specs=pl.BlockSpec((1, C, 1), lambda n, s, h: (n * 2 + s, 0, 0)),
        compiler_params=pltpu.CompilerParams(
            dimension_semantics=("parallel", "parallel", "arbitrary"),
            vmem_limit_bytes=vmem_limit,
        ),
    )(x)

    # Combine the 2-way partial sums + tiny 1x1 conv + sigmoid: leave to XLA.
    sums = sums_split.reshape(N, 2, C).sum(axis=1)                     # (N, C) f32
    pooled = sums * (1.0 / float(HW))
    scale = jax.nn.sigmoid(pooled @ w_t.astype(jnp.float32)
                           + bias.astype(jnp.float32))
    scale = scale[:, :, None].astype(x.dtype)                          # (N, C, 1)

    # Pass 2: re-read x tiled over HW and apply the precomputed scale.
    extra = {"input_output_aliases": {0: 0}} if donate_input else {}
    return pl.pallas_call(
        _apply_scale_kernel,
        out_shape=jax.ShapeDtypeStruct((N, C, HW), x.dtype),
        grid=(N, n_tiles),
        in_specs=[
            pl.BlockSpec((1, C, t_hw), lambda n, h: (n, 0, h)),
            pl.BlockSpec((1, C, 1), lambda n, h: (n, 0, 0)),
        ],
        out_specs=pl.BlockSpec((1, C, t_hw), lambda n, h: (n, 0, h)),
        compiler_params=pltpu.CompilerParams(
            dimension_semantics=("parallel", "parallel"),
            vmem_limit_bytes=vmem_limit,
        ),
        **extra,
    )(x, scale)


# --------------------------------------------------------------------------
# Public wrapper.
# --------------------------------------------------------------------------
def attention_refinement(x_nchw, weight, bias, *,
                         vmem_budget_bytes=None, donate_input=False):
    """AttentionRefinementModule forward.

    x_nchw: (N, C_in, H, W); weight: (C_out, C_in) 1x1-conv weight; bias: (C_out,).
    Set donate_input=True only if the caller does not need x afterwards.
    """
    N, C, H, W = x_nchw.shape
    C_out, C_in = weight.shape
    assert C_in == C, "conv in_channels must match the input channel count"
    assert C_out == C, "the broadcast multiply requires in_channels == out_channels"

    HW = H * W
    itemsize = jnp.dtype(x_nchw.dtype).itemsize

    physical = _physical_vmem_bytes()
    budget_cap = (physical * 4) // 5                      # ~80% of physical VMEM
    budget = budget_cap if vmem_budget_bytes is None else min(int(vmem_budget_bytes),
                                                              budget_cap)

    x = x_nchw.reshape(N, C, HW)                          # free view, no pad, no copy
    w_t = weight.T                                        # (C_in, C_out), tiny, one-time
    b2d = bias.reshape(1, C_out)

    # VMEM accounting for one batch item on the fused path:
    #   in + out double-buffered, plus f32 reduce temp for sub-f32 dtypes,
    #   plus double-buffered weight / bias.
    io_per_item = 4 * C * HW * itemsize
    tmp_per_item = C * HW * 4 if itemsize < 4 else 0
    w_bytes = 2 * C * C * jnp.dtype(weight.dtype).itemsize + 2 * C_out * 4

    if io_per_item + tmp_per_item + w_bytes <= budget:
        out = _arm_fused(x, w_t, b2d, N=N, C=C, HW=HW, itemsize=itemsize,
                         io_per_item=io_per_item, tmp_per_item=tmp_per_item,
                         w_bytes=w_bytes, budget=budget, physical=physical,
                         donate_input=donate_input)
    else:
        out = _arm_two_pass(x, w_t, bias, N=N, C=C, HW=HW, itemsize=itemsize,
                            budget=budget, physical=physical,
                            donate_input=donate_input)

    return out.reshape(N, C_out, H, W)


def reference(x_nchw, weight, bias):
    xf = x_nchw.astype(jnp.float32)
    pooled = jnp.mean(xf, axis=(2, 3))                                   # (N, C_in)
    s = jax.nn.sigmoid(pooled @ weight.astype(jnp.float32).T
                       + bias.astype(jnp.float32))                       # (N, C_out)
    return xf * s[:, :, None, None]


if __name__ == "__main__":
    key = jax.random.PRNGKey(0)
    N, C, H, W = 2, 8, 16, 16          # in_channels == out_channels == 8

    kx, kw, kb = jax.random.split(key, 3)
    x = jax.random.normal(kx, (N, C, H, W), dtype=jnp.float32)
    weight = jax.random.normal(kw, (C, C), dtype=jnp.float32) * 0.1
    bias = jax.random.normal(kb, (C,), dtype=jnp.float32) * 0.1

    ref = reference(x, weight, bias)

    # 1) Fused single-pass path (the common case).
    out = jax.block_until_ready(attention_refinement(x, weight, bias))
    assert out.shape == (N, C, H, W)
    assert jnp.allclose(out, ref, atol=1e-5, rtol=1e-5)

    # 2) Force the two-pass (HW-tiled) fallback with a tiny VMEM budget.
    out2 = jax.block_until_ready(
        attention_refinement(x, weight, bias, vmem_budget_bytes=16 * 1024))
    assert jnp.allclose(out2, ref, atol=1e-5, rtol=1e-5)

    # 3) Odd spatial size (H*W not a multiple of 128): fused path (full-extent
    #    HW block, no padding) and fallback path (iota-masked ragged tail).
    x_odd = jax.random.normal(kx, (N, C, 15, 20), dtype=jnp.float32)
    ref_odd = reference(x_odd, weight, bias)
    out_odd = jax.block_until_ready(attention_refinement(x_odd, weight, bias))
    assert jnp.allclose(out_odd, ref_odd, atol=1e-5, rtol=1e-5)
    out_odd2 = jax.block_until_ready(
        attention_refinement(x_odd, weight, bias, vmem_budget_bytes=16 * 1024))
    assert jnp.allclose(out_odd2, ref_odd, atol=1e-5, rtol=1e-5)

    # 4) bf16 data path (f32 accumulation for the pooled mean inside the kernel).
    x_bf16 = x.astype(jnp.bfloat16)
    out_bf16 = jax.block_until_ready(attention_refinement(x_bf16, weight, bias))
    assert out_bf16.dtype == jnp.bfloat16
    assert jnp.allclose(out_bf16.astype(jnp.float32),
                        reference(x_bf16, weight, bias), atol=5e-2, rtol=5e-2)

    # 5) Awkward batch count (partial last batch block on the fused cdiv grid).
    x7 = jax.random.normal(kx, (7, C, H, W), dtype=jnp.float32)
    out7 = jax.block_until_ready(attention_refinement(x7, weight, bias))
    assert jnp.allclose(out7, reference(x7, weight, bias), atol=1e-5, rtol=1e-5)

    print("KERNEL_OK")
</pallas_src>

<mosaic_0001>
module attributes {stable_mosaic.version = 11 : i64} {
  func.func @_fused_kernel(%arg0: i32, %arg1: memref<1x8x256xf32, #tpu.memory_space<vmem>>, %arg2: memref<8x8xf32, #tpu.memory_space<vmem>>, %arg3: memref<1x8xf32, #tpu.memory_space<vmem>>, %arg4: memref<1x8x256xf32, #tpu.memory_space<vmem>>) attributes {dimension_semantics = [#tpu.dimension_semantics<parallel>], iteration_bounds = array<i64: 2>, scalar_prefetch = 0 : i64, scratch_operands = 0 : i64, tpu.core_type = #tpu.core_type<tc>, window_params = [{transform_indices = @transform_0, window_bounds = array<i64: 1, 8, 256>}, {pipeline_mode = #tpu.pipeline_mode<synchronous>, transform_indices = @transform_1, window_bounds = array<i64: 8, 8>}, {pipeline_mode = #tpu.pipeline_mode<synchronous>, transform_indices = @transform_2, window_bounds = array<i64: 1, 8>}, {transform_indices = @transform_3, window_bounds = array<i64: 1, 8, 256>}]} {
    %c0 = arith.constant 0 : index
    %c0_0 = arith.constant 0 : index
    %c0_1 = arith.constant 0 : index
    %0 = vector.load %arg1[%c0, %c0_0, %c0_1] : memref<1x8x256xf32, #tpu.memory_space<vmem>>, vector<1x8x256xf32>
    %cst = arith.constant dense<0.000000e+00> : vector<1x8xf32>
    %1 = vector.multi_reduction <add>, %0, %cst [2] : vector<1x8x256xf32> to vector<1x8xf32>
    %cst_2 = arith.constant 3.906250e-03 : f32
    %2 = vector.broadcast %cst_2 : f32 to vector<1x8xf32>
    %3 = arith.mulf %1, %2 : vector<1x8xf32>
    %c0_3 = arith.constant 0 : index
    %c0_4 = arith.constant 0 : index
    %4 = vector.load %arg2[%c0_3, %c0_4] : memref<8x8xf32, #tpu.memory_space<vmem>>, vector<8x8xf32>
    %cst_5 = arith.constant dense<0.000000e+00> : vector<1x8xf32>
    %5 = tpu.matmul %3, %4, %cst_5 {dimension_numbers = #tpu.dot_dimension_numbers<[1], [0], [0], [1], [0, 0, 1, 1], [], []>} : vector<1x8xf32>, vector<8x8xf32>, vector<1x8xf32> -> vector<1x8xf32>
    %c0_6 = arith.constant 0 : index
    %c0_7 = arith.constant 0 : index
    %6 = vector.load %arg3[%c0_6, %c0_7] : memref<1x8xf32, #tpu.memory_space<vmem>>, vector<1x8xf32>
    %7 = arith.addf %5, %6 : vector<1x8xf32>
    %8 = arith.negf %7 : vector<1x8xf32>
    %9 = math.exp %8 : vector<1x8xf32>
    %cst_8 = arith.constant 1.000000e+00 : f32
    %10 = vector.broadcast %cst_8 : f32 to vector<1x8xf32>
    %11 = arith.addf %10, %9 : vector<1x8xf32>
    %12 = arith.divf %10, %11 : vector<1x8xf32>
    %13 = vector.shape_cast %12 : vector<1x8xf32> to vector<1x8x1xf32>
    %14 = vector.broadcast %13 : vector<1x8x1xf32> to vector<1x8x256xf32>
    %15 = arith.mulf %0, %14 : vector<1x8x256xf32>
    %c0_9 = arith.constant 0 : index
    %c0_10 = arith.constant 0 : index
    %c0_11 = arith.constant 0 : index
    %16 = vector.load %arg4[%c0_9, %c0_10, %c0_11] : memref<1x8x256xf32, #tpu.memory_space<vmem>>, vector<1x8x256xf32>
    tpu.vector_store %arg4[%c0_9, %c0_10, %c0_11], %15 {strides = array<i32>} : memref<1x8x256xf32, #tpu.memory_space<vmem>>, vector<1x8x256xf32>,
    return
  }
  func.func @transform_0(%arg0: i32) -> (i32, i32, i32) {
    %c0_i32 = arith.constant 0 : i32
    %c0_i32_0 = arith.constant 0 : i32
    %c0_i32_1 = arith.constant 0 : i32
    return %arg0, %c0_i32, %c0_i32_0 : i32, i32, i32
  }
  func.func @transform_1(%arg0: i32) -> (i32, i32) {
    %c0_i32 = arith.constant 0 : i32
    %c0_i32_0 = arith.constant 0 : i32
    %c0_i32_1 = arith.constant 0 : i32
    return %c0_i32, %c0_i32_0 : i32, i32
  }
  func.func @transform_2(%arg0: i32) -> (i32, i32) {
    %c0_i32 = arith.constant 0 : i32
    %c0_i32_0 = arith.constant 0 : i32
    %c0_i32_1 = arith.constant 0 : i32
    return %c0_i32, %c0_i32_0 : i32, i32
  }
  func.func @transform_3(%arg0: i32) -> (i32, i32, i32) {
    %c0_i32 = arith.constant 0 : i32
    %c0_i32_0 = arith.constant 0 : i32
    %c0_i32_1 = arith.constant 0 : i32
    return %arg0, %c0_i32, %c0_i32_0 : i32, i32, i32
  }
}

</mosaic_0001>

<llo_original>
// kernel: tpu_custom_call.1
$region0: #{tpu_custom_call.1}
  #allocation0 [shape = 'u32[]', space=smem, size = 0x4, offset = 0x4, fixed_abs, tag = 'smem constant byte address 0x4 - core index']
  #allocation1 [shape = 'u32[72,128]{1,0:T(1,128)}', space=vmem, size = 0x9000, scoped, tag = 'internal scratch']
  %s0 = inlined_call_operand.hbm [shape: f32[2,8,256], index: 0, kind: input, shape index: {}]
  %s1 = inlined_call_operand.hbm [shape: f32[8,8], index: 1, kind: input, shape index: {}]
  %s2 = inlined_call_operand.vmem [shape: f32[1,8], index: 2, kind: input, shape index: {}]
  %s3 = inlined_call_operand.hbm [shape: f32[2,8,256], index: 3, kind: output, shape index: {}]
  %s4 = sld [smem:[#allocation0]]
  $region53: #{tpu_custom_call.1} parent=0
    _
  %s6 = ssub.s32 1, %s4
  %s7 = scalar_select 0, %s6, %s4
  $region1: #{tpu_custom_call.1} parent=0
    #allocation2 [shape = 'u8[16384]{0}', space=vmem, size = 0x4000, scoped, tag = 'input window, operand 0']
    #allocation3 [shape = 's32[2]{0}', space=sflag, size = 0x8, scoped, tag = 'scoped memory for tpu_custom_call.1']
    #allocation4 [shape = 's32[2]{0}', space=sflag, size = 0x8, scoped, tag = 'scoped memory for tpu_custom_call.1']
    #allocation5 [shape = 'u8[4096]{0}', space=vmem, size = 0x1000, scoped, tag = 'input window, operand 1, single buffered']
    #allocation6 [shape = 's32[1]{0}', space=sflag, size = 0x4, scoped, tag = 'scoped memory for tpu_custom_call.1']
    #allocation7 [shape = 'u8[16384]{0}', space=vmem, size = 0x4000, scoped, tag = 'output window, operand 0']
    %8 = vsyncpa [#allocation3], 0
    %s9 = scalar_lea.sflag [#allocation3], 1
    %10 = vsyncpa %s9, 0
    %11 = vsyncpa [#allocation6], 0
    %12 = vsyncpa [#allocation4], 0
    %s13 = scalar_lea.sflag [#allocation4], 1
    %14 = vsyncpa %s13, 0
    loop: start=0, step=1, limit=4
    $region2: #{tpu_custom_call.1} parent=1 // loop_pre_header
      _
    $region3: #{tpu_custom_call.1} parent=1 // loop_header
      %s16 = sphi 0, %s20
      %p17 = scmp.ge.s32.totalorder %s16, 4
      %s26 = sphi 0, %s28
      %s29 = sphi 0, %s26
      %s30 = sphi 0, %s29
      %s46 = sphi 0, %s30
      %s50 = sphi 0, %s50
      %s52 = sphi 0, %s50
      %s53 = sphi 0, %s52
      %s67 = sphi 0, %s53
      %s71 = sphi 0, %s71
      %s73 = sphi 0, %s71
      %s74 = sphi 0, %s73
      %s88 = sphi 0, %s74
      %s94 = sphi 0, %s96
      %s97 = sphi 0, %s94
      %s98 = sphi 0, %s97
      %s114 = sphi 0, %s98
    $region4: #{tpu_custom_call.1} parent=1 // loop_header_branch
      %19 = sbr.rel (%p17) target = $region8
    $region5: #{tpu_custom_call.1} parent=1 // loop_body
      %s21 = ssub.s32 %s16, 1
      %s22 = ssub.s32 %s16, 2
      %s23 = sadd.s32 %s16, 1
      %s24 = ssub.s32 %s16, %s23
      %p25 = scmp.eq.s32.totalorder %s24, 0
      %s27 = sadd.s32 %s26, 1
      %s28 = scalar_select %p25, %s26, %s27
      %p31 = pneg %p25
      %p32 = scmp.eq.s32.totalorder %s16, 1
      %p33 = por %p31, %p32
      %p34 = scmp.ne.s32.totalorder %s26, %s29
      %p35 = scmp.eq.s32.totalorder %s16, 0
      %p36 = por %p34, %p35
      %p37 = scmp.ne.s32.totalorder %s26, %s29
      %p38 = scmp.eq.s32.totalorder %s21, 1
      %p39 = por %p37, %p38
      %p40 = scmp.ne.s32.totalorder %s29, %s30
      %p41 = scmp.eq.s32.totalorder %s21, 0
      %p42 = por %p40, %p41
      %p43 = scmp.ne.s32.totalorder %s29, %s30
      %p44 = scmp.eq.s32.totalorder %s22, 1
      %p45 = por %p43, %p44
      %p47 = scmp.ne.s32.totalorder %s30, %s46
      %p48 = scmp.eq.s32.totalorder %s22, 0
      %p49 = por %p47, %p48
      %s51 = sadd.s32 %s50, 1
      %p54 = scmp.eq.s32.totalorder %s16, 1
      %p55 = scmp.ne.s32.totalorder %s50, %s52
      %p56 = scmp.eq.s32.totalorder %s16, 0
      %p57 = por %p55, %p56
      %p58 = scmp.ne.s32.totalorder %s50, %s52
      %p59 = scmp.eq.s32.totalorder %s21, 1
      %p60 = por %p58, %p59
      %p61 = scmp.ne.s32.totalorder %s52, %s53
      %p62 = scmp.eq.s32.totalorder %s21, 0
      %p63 = por %p61, %p62
      %p64 = scmp.ne.s32.totalorder %s52, %s53
      %p65 = scmp.eq.s32.totalorder %s22, 1
      %p66 = por %p64, %p65
      %p68 = scmp.ne.s32.totalorder %s53, %s67
      %p69 = scmp.eq.s32.totalorder %s22, 0
      %p70 = por %p68, %p69
      %s72 = sadd.s32 %s71, 1
      %p75 = scmp.eq.s32.totalorder %s16, 1
      %p76 = scmp.ne.s32.totalorder %s71, %s73
      %p77 = scmp.eq.s32.totalorder %s16, 0
      %p78 = por %p76, %p77
      %p79 = scmp.ne.s32.totalorder %s71, %s73
      %p80 = scmp.eq.s32.totalorder %s21, 1
      %p81 = por %p79, %p80
      %p82 = scmp.ne.s32.totalorder %s73, %s74
      %p83 = scmp.eq.s32.totalorder %s21, 0
      %p84 = por %p82, %p83
      %p85 = scmp.ne.s32.totalorder %s73, %s74
      %p86 = scmp.eq.s32.totalorder %s22, 1
      %p87 = por %p85, %p86
      %p89 = scmp.ne.s32.totalorder %s74, %s88
      %p90 = scmp.eq.s32.totalorder %s22, 0
      %p91 = por %p89, %p90
      %s92 = ssub.s32 %s16, %s23
      %p93 = scmp.eq.s32.totalorder %s92, 0
      %s95 = sadd.s32 %s94, 1
      %s96 = scalar_select %p93, %s94, %s95
      %p99 = pneg %p93
      %p100 = scmp.eq.s32.totalorder %s16, 1
      %p101 = por %p99, %p100
      %p102 = scmp.ne.s32.totalorder %s94, %s97
      %p103 = scmp.eq.s32.totalorder %s16, 0
      %p104 = por %p102, %p103
      %p105 = scmp.ne.s32.totalorder %s94, %s97
      %p106 = scmp.eq.s32.totalorder %s21, 1
      %p107 = por %p105, %p106
      %p108 = scmp.ne.s32.totalorder %s97, %s98
      %p109 = scmp.eq.s32.totalorder %s21, 0
      %p110 = por %p108, %p109
      %p111 = scmp.ne.s32.totalorder %s97, %s98
      %p112 = scmp.eq.s32.totalorder %s22, 1
      %p113 = por %p111, %p112
      %p115 = scmp.ne.s32.totalorder %s98, %s114
      %p116 = scmp.eq.s32.totalorder %s22, 0
      %p117 = por %p115, %p116
      %p118 = scmp.le.s32.totalorder 1, %s16
      %p119 = scmp.lt.s32.totalorder %s16, 3
      %p120 = pnand %p118, %p119
      %p121 = pneg %p120
      // Predicated region
      $region9: #{tpu_custom_call.1} parent=5 // pred_check
        _
      $region10: #{tpu_custom_call.1} parent=5 // pred_check_branch
        %123 = sbr.rel (%p120) target = $region12
      $region11: #{tpu_custom_call.1} parent=5 // pred_region
        %s124 = ssub.s32 %s16, 1
        // Predicated region
        $region13: #{tpu_custom_call.1} parent=11 // pred_check
          %p125 = pneg %p63
        $region14: #{tpu_custom_call.1} parent=11 // pred_check_branch
          %127 = sbr.rel (%p125) target = $region16
        $region15: #{tpu_custom_call.1} parent=11 // pred_region
          %129 = vsyncadd [#allocation6], 0
          %s131 = sshll.u32 %s1, 4
          %s132 = int_to_ptr.hbm [resolvable:$true] %s131
          %s133 = sshll.u32 [#allocation5], 4
          %s134 = int_to_ptr.vmem [resolvable:$true] %s133
          %136 = dma.hbm_to_vmem [thread:$0]  %s132, 128, %s134, [#allocation6]
        $region16: #{tpu_custom_call.1} parent=11 // pred_fallthru
          _
        // Predicated region
        $region17: #{tpu_custom_call.1} parent=11 // pred_check
          %p137 = pneg %p84
        $region18: #{tpu_custom_call.1} parent=11 // pred_check_branch
          %139 = sbr.rel (%p137) target = $region20
        $region19: #{tpu_custom_call.1} parent=11 // pred_region
          _
        $region20: #{tpu_custom_call.1} parent=11 // pred_fallthru
          _
      $region12: #{tpu_custom_call.1} parent=5 // pred_fallthru
        _
      %p140 = scmp.lt.s32.totalorder %s16, 2
      // Predicated region
      $region21: #{tpu_custom_call.1} parent=5 // pred_check
        %p141 = pneg %p140
      $region22: #{tpu_custom_call.1} parent=5 // pred_check_branch
        %143 = sbr.rel (%p141) target = $region24
      $region23: #{tpu_custom_call.1} parent=5 // pred_region
        // Predicated region
        $region25: #{tpu_custom_call.1} parent=23 // pred_check
          %p144 = pneg %p36
        $region26: #{tpu_custom_call.1} parent=23 // pred_check_branch
          %146 = sbr.rel (%p144) target = $region28
        $region27: #{tpu_custom_call.1} parent=23 // pred_region
          %s147 = sand.u32 %s26, 1
          %s148 = scalar_lea.sflag [#allocation3], %s147
          %s149 = sand.u32 %s26, 1
          %s150 = smul.addr %s149, 16
          %s151 = scalar_lea.vmem [#allocation2], %s150
          %153 = vsyncadd %s148, 0
          %s154 = smul.addr %s16, 2
          %s155 = smul.addr %s154, 8
          %s156 = scalar_lea.hbm %s0, %s155
          %s158 = sshll.u32 %s156, 4
          %s159 = int_to_ptr.hbm [resolvable:$true] %s158
          %s160 = sshll.u32 %s151, 4
          %s161 = int_to_ptr.vmem [resolvable:$true] %s160
          %163 = dma.hbm_to_vmem [thread:$0]  %s159, 256, %s161, %s148
        $region28: #{tpu_custom_call.1} parent=23 // pred_fallthru
          _
      $region24: #{tpu_custom_call.1} parent=5 // pred_fallthru
        _
      %p164 = scmp.le.s32.totalorder 1, %s16
      %p165 = scmp.lt.s32.totalorder %s16, 3
      %p166 = pnand %p164, %p165
      %p167 = pneg %p166
      // Predicated region
      $region29: #{tpu_custom_call.1} parent=5 // pred_check
        _
      $region30: #{tpu_custom_call.1} parent=5 // pred_check_branch
        %169 = sbr.rel (%p166) target = $region32
      $region31: #{tpu_custom_call.1} parent=5 // pred_region
        %s170 = ssub.s32 %s16, 1
        %s171 = sand.u32 %s29, 1
        %s172 = scalar_lea.sflag [#allocation3], %s171
        %s173 = sand.u32 %s29, 1
        %s174 = smul.addr %s173, 16
        %s175 = scalar_lea.vmem [#allocation2], %s174
        // Predicated region
        $region33: #{tpu_custom_call.1} parent=31 // pred_check
          %p176 = pneg %p42
        $region34: #{tpu_custom_call.1} parent=31 // pred_check_branch
          %178 = sbr.rel (%p176) target = $region36
        $region35: #{tpu_custom_call.1} parent=31 // pred_region
          %180 = dma.done %s172, 256
        $region36: #{tpu_custom_call.1} parent=31 // pred_fallthru
          _
        // Predicated region
        $region37: #{tpu_custom_call.1} parent=31 // pred_check
          %p181 = pneg %p63
        $region38: #{tpu_custom_call.1} parent=31 // pred_check_branch
          %183 = sbr.rel (%p181) target = $region40
        $region39: #{tpu_custom_call.1} parent=31 // pred_region
          %185 = dma.done [#allocation6], 128
        $region40: #{tpu_custom_call.1} parent=31 // pred_fallthru
          _
        %s186 = sand.u32 %s29, 1
        %s187 = scalar_lea.sflag [#allocation3], %s186
        %s188 = sand.u32 %s29, 1
        %s189 = smul.addr %s188, 16
        %s190 = scalar_lea.vmem [#allocation2], %s189
        %p191 = pneg %p42
        %p192 = pneg %p39
        %p193 = pneg %p63
        %p194 = pneg %p60
        %p195 = pneg %p84
        %p196 = pneg %p81
        %p197 = pneg %p110
        %p198 = pneg %p107
        %s199 = sand.u32 %s97, 1
        %s200 = scalar_lea.sflag [#allocation4], %s199
        %s201 = sand.u32 %s97, 1
        %s202 = smul.addr %s201, 16
        %s203 = scalar_lea.vmem [#allocation7], %s202
        %v204 = vld [vmem:[%s175] sm:$0xff]
        %v205 = vld [vmem:[%s175 + $0x8] sm:$0xff]
        %v206 = vadd.f32 %v204, %v205
        %207 = vadd.xlane.f32.xlu0 %v206
        %v208 = vpop.xlane.xlu0 %207
        %v209 = vmul.f32 %v208, 0.00390625
        %v210 = vld [vmem:[#allocation5] sm:$0xff]
        %v211 = vld [vmem:[%s2] sm:$0x1]
        %v213 = vlaneseq
        %v214 = vand.u32 %v213, 127
        %v215 = vperm.slane %v209, %v214
        %vm216 = vcmask 64512
        %v217 = vsel %vm216, %v215, 0
        %219 = vmatpush.msra.mxu0 0.0
        %220 = vmatpush.msra.mxu0 0.0
        %221 = vmatpush.msra.mxu0 0.0
        %222 = vmatpush.msra.mxu0 0.0
        %223 = vmatpush.msra.mxu0 0.0
        %224 = vmatpush.msra.mxu0 0.0
        %225 = vmatpush.msra.mxu0 0.0
        %226 = vmatpush.msra.mxu0 0.0
        %227 = vmatpush.msra.mxu0 0.0
        %228 = vmatpush.msra.mxu0 0.0
        %229 = vmatpush.msra.mxu0 0.0
        %230 = vmatpush.msra.mxu0 0.0
        %231 = vmatpush.msra.mxu0 0.0
        %232 = vmatpush.msra.mxu0 0.0
        %233 = vmatpush.msra.mxu0 0.0
        %234 = vmatpush.msra.mxu0 %v210
        %235 = vmatmul.f32.gmra.mxu0 %v217
        %v236 = vpop.f32.mrf.mxu0
        %v237 = vadd.f32 %v211, %v236
        %238 = vdwg.mxu0
        %v239 = vxor.u32 %v237, 2147483648
        %v240 = vmul.f32 %v239, 1.442695
        %v241 = vpow.pop %v240
        %v242 = vadd.f32 %v241, 1.0
        %v243 = vrcp.pop %v242
        %v244 = vmul.f32 %v242, %v243
        %v245 = vsub.f32 1.0, %v244
        %v246 = vmul.f32 %v243, %v245
        %v247 = vadd.f32 %v243, %v246
        %vm248 = vweird.f32 %v242
        %vm249 = vweird.f32 %v243
        %vm250 = vmor %vm248, %vm249
        %v251 = vsel %vm250, %v243, %v247
        %v252 = vand.u32 2147483647, %v242
        %vm253 = vcmp.eq.f32.partialorder %v252, 8.507059e+37
        %v254 = vand.u32 %v242, 2147483648
        %v255 = vor.u32 1.1754944e-38, %v254
        %v256 = vsel %vm253, %v255, %v251
        %v257 = vmul.f32 1.0, %v256
        %v258 = vperm.slane %v257, 0
        %v259 = vlaneseq
        %v260 = vshrl.u32 %v259, 7
        %262 = vset.pattern.permute.xlu0 %v260
        %263 = vperm.xlu0 %262, %v258
        %v264 = vpop.permute.xlu0 %263
        %v265 = vmul.f32 %v204, %v264
        %v266 = vmul.f32 %v205, %v264
        %267 = vst [vmem:[%s203] sm:$0xff] %v265
        %268 = vst [vmem:[%s203 + $0x8] sm:$0xff] %v266
        %s269 = sand.u32 %s97, 1
        %s270 = scalar_lea.sflag [#allocation4], %s269
        %s271 = sand.u32 %s97, 1
        %s272 = smul.addr %s271, 16
        %s273 = scalar_lea.vmem [#allocation7], %s272
        // Predicated region
        $region41: #{tpu_custom_call.1} parent=31 // pred_check
          %p274 = pneg %p107
        $region42: #{tpu_custom_call.1} parent=31 // pred_check_branch
          %276 = sbr.rel (%p274) target = $region44
        $region43: #{tpu_custom_call.1} parent=31 // pred_region
          %278 = vsyncadd %s270, 0
          %s279 = smul.addr %s21, 2
          %s280 = smul.addr %s279, 8
          %s281 = scalar_lea.hbm %s3, %s280
          %s283 = sshll.u32 %s273, 4
          %s284 = int_to_ptr.vmem [resolvable:$true] %s283
          %s285 = sshll.u32 %s281, 4
          %s286 = int_to_ptr.hbm [resolvable:$true] %s285
          %288 = dma.vmem_to_hbm [thread:$0]  %s284, 256, %s286, %s270
        $region44: #{tpu_custom_call.1} parent=31 // pred_fallthru
          _
      $region32: #{tpu_custom_call.1} parent=5 // pred_fallthru
        _
      %p289 = scmp.le.s32.totalorder 2, %s16
      // Predicated region
      $region45: #{tpu_custom_call.1} parent=5 // pred_check
        %p290 = pneg %p289
      $region46: #{tpu_custom_call.1} parent=5 // pred_check_branch
        %292 = sbr.rel (%p290) target = $region48
      $region47: #{tpu_custom_call.1} parent=5 // pred_region
        %s293 = ssub.s32 %s16, 2
        // Predicated region
        $region49: #{tpu_custom_call.1} parent=47 // pred_check
          %p294 = pneg %p113
        $region50: #{tpu_custom_call.1} parent=47 // pred_check_branch
          %296 = sbr.rel (%p294) target = $region52
        $region51: #{tpu_custom_call.1} parent=47 // pred_region
          %s297 = sand.u32 %s98, 1
          %s298 = scalar_lea.sflag [#allocation4], %s297
          %s299 = sand.u32 %s98, 1
          %s300 = smul.addr %s299, 16
          %s301 = scalar_lea.vmem [#allocation7], %s300
          %303 = dma.done %s298, 256
        $region52: #{tpu_custom_call.1} parent=47 // pred_fallthru
          _
      $region48: #{tpu_custom_call.1} parent=5 // pred_fallthru
        _
    $region6: #{tpu_custom_call.1} parent=1 // loop_footer
      %s20 = sadd.s32 1, %s16
    $region7: #{tpu_custom_call.1} parent=1 // loop_footer_branch
      %15 = sbr.rel target = $region3
    $region8: #{tpu_custom_call.1} parent=1 // loop_exit
      _
    %304 = vsyncpa [#allocation3], 1
    %s305 = scalar_lea.sflag [#allocation3], 1
    %306 = vsyncpa %s305, 1
    %307 = vsyncpa [#allocation6], 1
    %308 = vsyncpa [#allocation4], 1
    %s309 = scalar_lea.sflag [#allocation4], 1
    %310 = vsyncpa %s309, 1

</llo_original>
